<compile_context>
chip_gen: v7x
topology: tpu7x:2x2x1
jax: 0.10.0
libtpu: 0.0.40
codegen_flags: <defaults>
</compile_context>

<pallas_src>
import functools

import jax
import jax.numpy as jnp
from jax.experimental import pallas as pl
from jax.experimental.pallas import tpu as pltpu


_EPS = 1e-12            # torch.nn.functional.normalize epsilon
_HIDDEN = 256           # hidden width fixed by the module
_LANE = 128             # TPU lane width
_SUBLANE = 8            # TPU sublane width
_DEFAULT_TILE_ROWS = 512


def _round_up(x, m):
    return ((x + m - 1) // m) * m


def _pad_to(a, shape):
    return jnp.pad(a, [(0, t - s) for s, t in zip(a.shape, shape)])


# ---------------------------------------------------------------------------
# In-kernel math (shared by all kernels).
# ---------------------------------------------------------------------------
def _class_scores(x_ref, w1_ref, w2_ref, b2_ref, attr_ref):
    """2-layer MLP -> ReLU -> L2 normalize -> class scores.  Returns [TB, C_pad] f32.

    Matmul operands are bf16 (MXU) with f32 accumulation; elementwise math is f32.
    Zero-padded F columns / A columns / attr rows contribute nothing, so the result
    over the real classes is identical to the unpadded math.
    """
    h = jnp.maximum(
        jnp.dot(x_ref[...], w1_ref[...], preferred_element_type=jnp.float32), 0.0
    )
    # TODO(synk): nn.Dropout() is stochastic in training mode; treated as identity here.
    xw = jnp.dot(h.astype(jnp.bfloat16), w2_ref[...],
                 preferred_element_type=jnp.float32) + b2_ref[...]
    sumsq = jnp.sum(xw * xw, axis=-1, keepdims=True)
    # normalizeFeaturesL2: one rsqrt (EUP) + VPU multiply; eps as in F.normalize.
    xw = xw * jax.lax.rsqrt(jnp.maximum(sumsq, _EPS * _EPS))
    return jnp.dot(xw.astype(jnp.bfloat16), attr_ref[...],
                   preferred_element_type=jnp.float32)


def _hinge_per_row(scores, labels_col, margin, *, num_classes, batch_size, tile_rows):
    """Per-row clamped SJE hinge loss; padded classes and padded rows masked.  [TB,1]."""
    class_ids = jax.lax.broadcasted_iota(jnp.int32, scores.shape, 1)
    label_mask = class_ids == labels_col                                   # [TB, C_pad]
    gt = jnp.sum(jnp.where(label_mask, scores, 0.0), axis=-1, keepdims=True)
    losses = margin + scores - gt
    losses = jnp.where(label_mask, 0.0, losses)                 # zero the gt column
    losses = jnp.where(class_ids < num_classes, losses, -jnp.inf)  # drop padded classes
    per_row = jnp.maximum(jnp.max(losses, axis=-1, keepdims=True), 0.0)    # [TB, 1]
    row_ids = (pl.program_id(0) * tile_rows
               + jax.lax.broadcasted_iota(jnp.int32, per_row.shape, 0))
    return jnp.where(row_ids < batch_size, per_row, 0.0)        # zero padded batch rows


def _argmax_rows(scores, *, num_classes):
    """First-occurrence argmax over the real classes, fully in-kernel.  [TB, 1] int32.

    Float-encoded class id is exact while num_classes - 1 < 2**24.
    """
    class_ids = jax.lax.broadcasted_iota(jnp.int32, scores.shape, 1)
    valid = class_ids < num_classes
    masked = jnp.where(valid, scores, -jnp.inf)
    row_max = jnp.max(masked, axis=-1, keepdims=True)
    neg_ids = jnp.where((masked == row_max) & valid,
                        -class_ids.astype(jnp.float32), -jnp.inf)
    return (-jnp.max(neg_ids, axis=-1, keepdims=True)).astype(jnp.int32)


# ---------------------------------------------------------------------------
# Kernels.
# ---------------------------------------------------------------------------
def _train_kernel(margin_ref, x_ref, w1_ref, w2_ref, b2_ref, attr_ref, lab_ref,
                  loss_ref, *, num_classes, batch_size, tile_rows):
    scores = _class_scores(x_ref, w1_ref, w2_ref, b2_ref, attr_ref)
    loss_ref[...] = _hinge_per_row(scores, lab_ref[...], margin_ref[0, 0],
                                   num_classes=num_classes, batch_size=batch_size,
                                   tile_rows=tile_rows)


def _test_kernel(x_ref, w1_ref, w2_ref, b2_ref, attr_ref, pred_ref, *, num_classes):
    scores = _class_scores(x_ref, w1_ref, w2_ref, b2_ref, attr_ref)
    pred_ref[...] = _argmax_rows(scores, num_classes=num_classes)


def _train_and_predict_kernel(margin_ref, x_ref, w1_ref, w2_ref, b2_ref, attr_ref,
                              lab_ref, loss_ref, pred_ref, *, num_classes, batch_size,
                              tile_rows):
    scores = _class_scores(x_ref, w1_ref, w2_ref, b2_ref, attr_ref)
    loss_ref[...] = _hinge_per_row(scores, lab_ref[...], margin_ref[0, 0],
                                   num_classes=num_classes, batch_size=batch_size,
                                   tile_rows=tile_rows)
    pred_ref[...] = _argmax_rows(scores, num_classes=num_classes)


# ---------------------------------------------------------------------------
# Shared pallas_call plumbing.
# ---------------------------------------------------------------------------
def _vmem_limit_bytes(TB, F_pad, A_pad, C_pad):
    """Rough VMEM budget (bytes) with generous headroom, capped for v7x (64 MiB)."""
    resident = 2 * (F_pad * _HIDDEN + _HIDDEN * A_pad + A_pad * C_pad) + 4 * A_pad
    streamed = 2 * (2 * TB * F_pad + 4 * TB + 4 * TB)       # dbl-buffered x, labels, outs
    activations = 4 * TB * (_HIDDEN + 2 * A_pad + 2 * C_pad)
    est = resident + streamed + activations
    return int(min(max(2 * est, 32 << 20), 48 << 20))


def _prepare(img_features, all_class_attributes, w1, w2, b2, tile_rows):
    """Pad / cast inputs and build grid, BlockSpecs and compiler params."""
    B, F = img_features.shape
    A, C = all_class_attributes.shape
    F_pad = _round_up(F, _LANE)
    A_pad = _round_up(A, _LANE)
    C_pad = _round_up(C, _LANE)
    TB = min(_round_up(B, _SUBLANE), _round_up(tile_rows, _SUBLANE))
    B_pad = _round_up(B, TB)
    grid = (pl.cdiv(B_pad, TB),)

    p = dict(B=B, C=C, TB=TB, B_pad=B_pad, grid=grid)
    # bf16 for MXU operands; b2 stays f32 (added after f32 accumulation).
    p["x"] = _pad_to(img_features.astype(jnp.bfloat16), (B_pad, F_pad))
    p["w1"] = _pad_to(w1.astype(jnp.bfloat16), (F_pad, _HIDDEN))
    p["w2"] = _pad_to(w2.astype(jnp.bfloat16), (_HIDDEN, A_pad))
    p["b2"] = _pad_to(b2.astype(jnp.float32).reshape(1, -1), (1, A_pad))
    p["attrs"] = _pad_to(all_class_attributes.astype(jnp.bfloat16), (A_pad, C_pad))

    p["x_spec"] = pl.BlockSpec((TB, F_pad), lambda i: (i, 0))          # streamed per tile
    p["w1_spec"] = pl.BlockSpec((F_pad, _HIDDEN), lambda i: (0, 0))    # resident
    p["w2_spec"] = pl.BlockSpec((_HIDDEN, A_pad), lambda i: (0, 0))    # resident
    p["b2_spec"] = pl.BlockSpec((1, A_pad), lambda i: (0, 0))          # resident
    p["attr_spec"] = pl.BlockSpec((A_pad, C_pad), lambda i: (0, 0))    # resident
    p["lab_spec"] = pl.BlockSpec((TB, 1), lambda i: (i, 0))
    p["margin_spec"] = pl.BlockSpec(memory_space=pltpu.MemorySpace.SMEM)  # scalar, no retrace
    p["col_spec"] = pl.BlockSpec((TB, 1), lambda i: (i, 0))            # per-row outputs

    p["params"] = pltpu.CompilerParams(
        dimension_semantics=("parallel",),     # independent batch tiles -> both v7x TCs
        vmem_limit_bytes=_vmem_limit_bytes(TB, F_pad, A_pad, C_pad),
    )
    return p


# ---------------------------------------------------------------------------
# Wrappers (jit-ted: padding/casts/final reduce fuse into the same dispatch).
# ---------------------------------------------------------------------------
@functools.partial(jax.jit, static_argnames=("tile_rows",))
def sje_mlp_train(img_features, all_class_attributes, labels, w1, w2, b2, margin,
                  *, tile_rows=_DEFAULT_TILE_ROWS):
    """Scalar hinge loss (matches SJE_MLP.forward_train with dropout = identity)."""
    p = _prepare(img_features, all_class_attributes, w1, w2, b2, tile_rows)
    labels2d = _pad_to(labels.astype(jnp.int32).reshape(-1, 1), (p["B_pad"], 1))
    margin2d = jnp.asarray(margin, jnp.float32).reshape(1, 1)
    kernel = functools.partial(_train_kernel, num_classes=p["C"], batch_size=p["B"],
                               tile_rows=p["TB"])
    per_row = pl.pallas_call(
        kernel,
        grid=p["grid"],
        out_shape=jax.ShapeDtypeStruct((p["B_pad"], 1), jnp.float32),
        in_specs=[p["margin_spec"], p["x_spec"], p["w1_spec"], p["w2_spec"],
                  p["b2_spec"], p["attr_spec"], p["lab_spec"]],
        out_specs=p["col_spec"],
        compiler_params=p["params"],
    )(margin2d, p["x"], p["w1"], p["w2"], p["b2"], p["attrs"], labels2d)
    # Padded rows are already zeroed in-kernel; final mean is one tiny XLA reduce.
    return jnp.sum(per_row) / p["B"]


@functools.partial(jax.jit, static_argnames=("tile_rows",))
def sje_mlp_test(img_features, all_class_attributes, w1, w2, b2,
                 *, tile_rows=_DEFAULT_TILE_ROWS):
    """Predicted class index per row (matches SJE_MLP.forward_test); argmax in-kernel."""
    p = _prepare(img_features, all_class_attributes, w1, w2, b2, tile_rows)
    kernel = functools.partial(_test_kernel, num_classes=p["C"])
    preds = pl.pallas_call(
        kernel,
        grid=p["grid"],
        out_shape=jax.ShapeDtypeStruct((p["B_pad"], 1), jnp.int32),
        in_specs=[p["x_spec"], p["w1_spec"], p["w2_spec"], p["b2_spec"], p["attr_spec"]],
        out_specs=p["col_spec"],
        compiler_params=p["params"],
    )(p["x"], p["w1"], p["w2"], p["b2"], p["attrs"])
    return preds[:p["B"], 0]


@functools.partial(jax.jit, static_argnames=("tile_rows",))
def sje_mlp_train_and_predict(img_features, all_class_attributes, labels, w1, w2, b2,
                              margin, *, tile_rows=_DEFAULT_TILE_ROWS):
    """Fused: (scalar loss, [B] int32 predictions) from a single pallas_call."""
    p = _prepare(img_features, all_class_attributes, w1, w2, b2, tile_rows)
    labels2d = _pad_to(labels.astype(jnp.int32).reshape(-1, 1), (p["B_pad"], 1))
    margin2d = jnp.asarray(margin, jnp.float32).reshape(1, 1)
    kernel = functools.partial(_train_and_predict_kernel, num_classes=p["C"],
                               batch_size=p["B"], tile_rows=p["TB"])
    per_row, preds = pl.pallas_call(
        kernel,
        grid=p["grid"],
        out_shape=(jax.ShapeDtypeStruct((p["B_pad"], 1), jnp.float32),
                   jax.ShapeDtypeStruct((p["B_pad"], 1), jnp.int32)),
        in_specs=[p["margin_spec"], p["x_spec"], p["w1_spec"], p["w2_spec"],
                  p["b2_spec"], p["attr_spec"], p["lab_spec"]],
        out_specs=(p["col_spec"], p["col_spec"]),
        compiler_params=p["params"],
    )(margin2d, p["x"], p["w1"], p["w2"], p["b2"], p["attrs"], labels2d)
    return jnp.sum(per_row) / p["B"], preds[:p["B"], 0]


if __name__ == "__main__":
    # Small shapes consistent with the module.
    B = 8                     # batch
    F = 32                    # img_feature_size
    A = 16                    # num_attributes
    C = 10                    # num_classes
    H = _HIDDEN               # hidden size fixed by the module
    margin = 1.0

    key = jax.random.PRNGKey(0)
    k_x, k_w1, k_w2, k_b2, k_attr, k_lab = jax.random.split(key, 6)

    img_features = jax.random.normal(k_x, (B, F), dtype=jnp.float32)
    all_class_attributes = jax.random.normal(k_attr, (A, C), dtype=jnp.float32)
    labels = jax.random.randint(k_lab, (B,), 0, C, dtype=jnp.int32)

    # Deterministic parameter init (Linear(F,256,bias=False), Linear(256,A)).
    w1 = jax.random.normal(k_w1, (F, H), dtype=jnp.float32) * (1.0 / jnp.sqrt(F))
    w2 = jax.random.normal(k_w2, (H, A), dtype=jnp.float32) * (1.0 / jnp.sqrt(H))
    b2 = jax.random.normal(k_b2, (1, A), dtype=jnp.float32) * 0.01

    loss = sje_mlp_train(img_features, all_class_attributes, labels, w1, w2, b2, margin)
    preds = sje_mlp_test(img_features, all_class_attributes, w1, w2, b2)
    fused_loss, fused_preds = sje_mlp_train_and_predict(
        img_features, all_class_attributes, labels, w1, w2, b2, margin)
    jax.block_until_ready((loss, preds, fused_loss, fused_preds))

    # Pure-JAX reference using the same bf16-matmul / f32-elementwise recipe.
    def ref():
        xb = img_features.astype(jnp.bfloat16)
        h = jnp.maximum(jnp.dot(xb, w1.astype(jnp.bfloat16),
                                preferred_element_type=jnp.float32), 0.0)
        xw = jnp.dot(h.astype(jnp.bfloat16), w2.astype(jnp.bfloat16),
                     preferred_element_type=jnp.float32) + b2
        xw = xw * jax.lax.rsqrt(
            jnp.maximum(jnp.sum(xw * xw, axis=-1, keepdims=True), _EPS * _EPS))
        s = jnp.dot(xw.astype(jnp.bfloat16), all_class_attributes.astype(jnp.bfloat16),
                    preferred_element_type=jnp.float32)
        gt = s[jnp.arange(B), labels][:, None]
        l = margin + s - gt
        l = l.at[jnp.arange(B), labels].set(0.0)
        return jnp.mean(jnp.clip(jnp.max(l, axis=1), 0.0)), jnp.argmax(s, axis=1)

    ref_loss, ref_preds = ref()
    assert jnp.allclose(loss, ref_loss, atol=1e-3, rtol=1e-3), (loss, ref_loss)
    assert jnp.array_equal(preds, ref_preds), (preds, ref_preds)
    assert jnp.allclose(fused_loss, ref_loss, atol=1e-3, rtol=1e-3), (fused_loss, ref_loss)
    assert jnp.array_equal(fused_preds, ref_preds), (fused_preds, ref_preds)

    print("KERNEL_OK")
</pallas_src>

<mosaic_0001>
module attributes {stable_mosaic.version = 11 : i64} {
  func.func @_train_kernel(%arg0: i32, %arg1: memref<1x1xf32, #tpu.memory_space<smem>>, %arg2: memref<8x128xbf16, #tpu.memory_space<vmem>>, %arg3: memref<128x256xbf16, #tpu.memory_space<vmem>>, %arg4: memref<256x128xbf16, #tpu.memory_space<vmem>>, %arg5: memref<1x128xf32, #tpu.memory_space<vmem>>, %arg6: memref<128x128xbf16, #tpu.memory_space<vmem>>, %arg7: memref<8x1xi32, #tpu.memory_space<vmem>>, %arg8: memref<8x1xf32, #tpu.memory_space<vmem>>) attributes {dimension_semantics = [#tpu.dimension_semantics<parallel>], iteration_bounds = array<i64: 1>, scalar_prefetch = 0 : i64, scratch_operands = 0 : i64, tpu.core_type = #tpu.core_type<tc>, window_params = [{transform_indices = @transform_0, window_bounds = array<i64: 1, 1>}, {transform_indices = @transform_1, window_bounds = array<i64: 8, 128>}, {pipeline_mode = #tpu.pipeline_mode<synchronous>, transform_indices = @transform_2, window_bounds = array<i64: 128, 256>}, {pipeline_mode = #tpu.pipeline_mode<synchronous>, transform_indices = @transform_3, window_bounds = array<i64: 256, 128>}, {pipeline_mode = #tpu.pipeline_mode<synchronous>, transform_indices = @transform_4, window_bounds = array<i64: 1, 128>}, {pipeline_mode = #tpu.pipeline_mode<synchronous>, transform_indices = @transform_5, window_bounds = array<i64: 128, 128>}, {transform_indices = @transform_6, window_bounds = array<i64: 8, 1>}, {transform_indices = @transform_7, window_bounds = array<i64: 8, 1>}]} {
    %c0 = arith.constant 0 : index
    %c0_0 = arith.constant 0 : index
    %0 = vector.load %arg2[%c0, %c0_0] : memref<8x128xbf16, #tpu.memory_space<vmem>>, vector<8x128xbf16>
    %c0_1 = arith.constant 0 : index
    %c0_2 = arith.constant 0 : index
    %1 = vector.load %arg3[%c0_1, %c0_2] : memref<128x256xbf16, #tpu.memory_space<vmem>>, vector<128x256xbf16>
    %cst = arith.constant dense<0.000000e+00> : vector<8x256xf32>
    %2 = tpu.matmul %0, %1, %cst {dimension_numbers = #tpu.dot_dimension_numbers<[1], [0], [0], [1], [0, 0, 1, 1], [], []>} : vector<8x128xbf16>, vector<128x256xbf16>, vector<8x256xf32> -> vector<8x256xf32>
    %cst_3 = arith.constant 0.000000e+00 : f32
    %3 = vector.broadcast %cst_3 : f32 to vector<8x256xf32>
    %4 = arith.maximumf %2, %3 : vector<8x256xf32>
    %5 = arith.truncf %4 : vector<8x256xf32> to vector<8x256xbf16>
    %c0_4 = arith.constant 0 : index
    %c0_5 = arith.constant 0 : index
    %6 = vector.load %arg4[%c0_4, %c0_5] : memref<256x128xbf16, #tpu.memory_space<vmem>>, vector<256x128xbf16>
    %cst_6 = arith.constant dense<0.000000e+00> : vector<8x128xf32>
    %7 = tpu.matmul %5, %6, %cst_6 {dimension_numbers = #tpu.dot_dimension_numbers<[1], [0], [0], [1], [0, 0, 1, 1], [], []>} : vector<8x256xbf16>, vector<256x128xbf16>, vector<8x128xf32> -> vector<8x128xf32>
    %c0_7 = arith.constant 0 : index
    %c0_8 = arith.constant 0 : index
    %8 = vector.load %arg5[%c0_7, %c0_8] : memref<1x128xf32, #tpu.memory_space<vmem>>, vector<1x128xf32>
    %9 = vector.broadcast %8 : vector<1x128xf32> to vector<8x128xf32>
    %10 = arith.addf %7, %9 : vector<8x128xf32>
    %11 = arith.mulf %10, %10 : vector<8x128xf32>
    %cst_9 = arith.constant dense<0.000000e+00> : vector<8xf32>
    %12 = vector.multi_reduction <add>, %11, %cst_9 [1] : vector<8x128xf32> to vector<8xf32>
    %13 = vector.shape_cast %12 : vector<8xf32> to vector<8x1xf32>
    %cst_10 = arith.constant 1.000000e-24 : f32
    %14 = vector.broadcast %cst_10 : f32 to vector<8x1xf32>
    %15 = arith.maximumf %13, %14 : vector<8x1xf32>
    %16 = math.rsqrt %15 : vector<8x1xf32>
    %17 = vector.broadcast %16 : vector<8x1xf32> to vector<8x128xf32>
    %18 = arith.mulf %10, %17 : vector<8x128xf32>
    %19 = arith.truncf %18 : vector<8x128xf32> to vector<8x128xbf16>
    %c0_11 = arith.constant 0 : index
    %c0_12 = arith.constant 0 : index
    %20 = vector.load %arg6[%c0_11, %c0_12] : memref<128x128xbf16, #tpu.memory_space<vmem>>, vector<128x128xbf16>
    %cst_13 = arith.constant dense<0.000000e+00> : vector<8x128xf32>
    %21 = tpu.matmul %19, %20, %cst_13 {dimension_numbers = #tpu.dot_dimension_numbers<[1], [0], [0], [1], [0, 0, 1, 1], [], []>} : vector<8x128xbf16>, vector<128x128xbf16>, vector<8x128xf32> -> vector<8x128xf32>
    %c0_14 = arith.constant 0 : index
    %c0_15 = arith.constant 0 : index
    %22 = vector.load %arg7[%c0_14, %c0_15] : memref<8x1xi32, #tpu.memory_space<vmem>>, vector<8x1xi32>
    %c0_16 = arith.constant 0 : index
    %c0_17 = arith.constant 0 : index
    %23 = memref.load %arg1[%c0_16, %c0_17] : memref<1x1xf32, #tpu.memory_space<smem>>
    %24 = tpu.iota {dimensions = array<i32: 1>} : vector<8x128xi32>
    %25 = vector.broadcast %22 : vector<8x1xi32> to vector<8x128xi32>
    %26 = arith.cmpi eq, %24, %25 : vector<8x128xi32>
    %cst_18 = arith.constant 0.000000e+00 : f32
    %27 = vector.broadcast %cst_18 : f32 to vector<8x128xf32>
    %28 = arith.select %26, %21, %27 : vector<8x128xi1>, vector<8x128xf32>
    %cst_19 = arith.constant dense<0.000000e+00> : vector<8xf32>
    %29 = vector.multi_reduction <add>, %28, %cst_19 [1] : vector<8x128xf32> to vector<8xf32>
    %30 = vector.shape_cast %29 : vector<8xf32> to vector<8x1xf32>
    %31 = vector.broadcast %23 : f32 to vector<8x128xf32>
    %32 = arith.addf %31, %21 : vector<8x128xf32>
    %33 = vector.broadcast %30 : vector<8x1xf32> to vector<8x128xf32>
    %34 = arith.subf %32, %33 : vector<8x128xf32>
    %cst_20 = arith.constant 0.000000e+00 : f32
    %35 = vector.broadcast %cst_20 : f32 to vector<8x128xf32>
    %36 = arith.select %26, %35, %34 : vector<8x128xi1>, vector<8x128xf32>
    %c10_i32 = arith.constant 10 : i32
    %37 = vector.broadcast %c10_i32 : i32 to vector<8x128xi32>
    %38 = arith.cmpi slt, %24, %37 : vector<8x128xi32>
    %cst_21 = arith.constant 0xFF800000 : f32
    %39 = vector.broadcast %cst_21 : f32 to vector<8x128xf32>
    %40 = arith.select %38, %36, %39 : vector<8x128xi1>, vector<8x128xf32>
    %cst_22 = arith.constant dense<0xFF800000> : vector<8xf32>
    %41 = vector.multi_reduction <maximumf>, %40, %cst_22 [1] : vector<8x128xf32> to vector<8xf32>
    %42 = vector.shape_cast %41 : vector<8xf32> to vector<8x1xf32>
    %cst_23 = arith.constant 0.000000e+00 : f32
    %43 = vector.broadcast %cst_23 : f32 to vector<8x1xf32>
    %44 = arith.maximumf %42, %43 : vector<8x1xf32>
    %c8_i32 = arith.constant 8 : i32
    %45 = arith.muli %arg0, %c8_i32 : i32
    %46 = tpu.iota {dimensions = array<i32: 0>} : vector<8x1xi32>
    %47 = vector.broadcast %45 : i32 to vector<8x1xi32>
    %48 = arith.addi %47, %46 : vector<8x1xi32>
    %c8_i32_24 = arith.constant 8 : i32
    %49 = vector.broadcast %c8_i32_24 : i32 to vector<8x1xi32>
    %50 = arith.cmpi slt, %48, %49 : vector<8x1xi32>
    %cst_25 = arith.constant 0.000000e+00 : f32
    %51 = vector.broadcast %cst_25 : f32 to vector<8x1xf32>
    %52 = arith.select %50, %44, %51 : vector<8x1xi1>, vector<8x1xf32>
    %c0_26 = arith.constant 0 : index
    %c0_27 = arith.constant 0 : index
    %53 = vector.load %arg8[%c0_26, %c0_27] : memref<8x1xf32, #tpu.memory_space<vmem>>, vector<8x1xf32>
    tpu.vector_store %arg8[%c0_26, %c0_27], %52 {strides = array<i32>} : memref<8x1xf32, #tpu.memory_space<vmem>>, vector<8x1xf32>,
    return
  }
  func.func @transform_0(%arg0: i32) -> (i32, i32) {
    %c0_i32 = arith.constant 0 : i32
    %c0_i32_0 = arith.constant 0 : i32
    %c0_i32_1 = arith.constant 0 : i32
    return %c0_i32, %c0_i32_0 : i32, i32
  }
  func.func @transform_1(%arg0: i32) -> (i32, i32) {
    %c0_i32 = arith.constant 0 : i32
    %c0_i32_0 = arith.constant 0 : i32
    return %arg0, %c0_i32 : i32, i32
  }
  func.func @transform_2(%arg0: i32) -> (i32, i32) {
    %c0_i32 = arith.constant 0 : i32
    %c0_i32_0 = arith.constant 0 : i32
    %c0_i32_1 = arith.constant 0 : i32
    return %c0_i32, %c0_i32_0 : i32, i32
  }
  func.func @transform_3(%arg0: i32) -> (i32, i32) {
    %c0_i32 = arith.constant 0 : i32
    %c0_i32_0 = arith.constant 0 : i32
    %c0_i32_1 = arith.constant 0 : i32
    return %c0_i32, %c0_i32_0 : i32, i32
  }
  func.func @transform_4(%arg0: i32) -> (i32, i32) {
    %c0_i32 = arith.constant 0 : i32
    %c0_i32_0 = arith.constant 0 : i32
    %c0_i32_1 = arith.constant 0 : i32
    return %c0_i32, %c0_i32_0 : i32, i32
  }
  func.func @transform_5(%arg0: i32) -> (i32, i32) {
    %c0_i32 = arith.constant 0 : i32
    %c0_i32_0 = arith.constant 0 : i32
    %c0_i32_1 = arith.constant 0 : i32
    return %c0_i32, %c0_i32_0 : i32, i32
  }
  func.func @transform_6(%arg0: i32) -> (i32, i32) {
    %c0_i32 = arith.constant 0 : i32
    %c0_i32_0 = arith.constant 0 : i32
    return %arg0, %c0_i32 : i32, i32
  }
  func.func @transform_7(%arg0: i32) -> (i32, i32) {
    %c0_i32 = arith.constant 0 : i32
    %c0_i32_0 = arith.constant 0 : i32
    return %arg0, %c0_i32 : i32, i32
  }
}

</mosaic_0001>

<llo_original>
// kernel: sje_mlp_train.1
$region0: #{sje_mlp_train.1}
  #allocation0 [shape = 'u32[]', space=smem, size = 0x4, offset = 0x4, fixed_abs, tag = 'smem constant byte address 0x4 - core index']
  #allocation1 [shape = 'u32[144,128]{1,0:T(1,128)}', space=vmem, size = 0x12000, scoped, tag = 'internal scratch']
  #allocation2 [shape = 'f32[1,1]{1,0:T(1,128)S(6)}', space=smem, size = 0x200, scoped, tag = 'scoped memory for sje_mlp_train.1']
  %s0 = inlined_call_operand.<no memory space> [shape: f32[1,1], index: 0, kind: input, shape index: {}]
  %s1 = inlined_call_operand.vmem [shape: bf16[8,128], index: 1, kind: input, shape index: {}]
  %s2 = inlined_call_operand.vmem [shape: bf16[128,256], index: 2, kind: input, shape index: {}]
  %s3 = inlined_call_operand.vmem [shape: bf16[256,128], index: 3, kind: input, shape index: {}]
  %s4 = inlined_call_operand.vmem [shape: f32[1,128], index: 4, kind: input, shape index: {}]
  %s5 = inlined_call_operand.vmem [shape: bf16[128,128], index: 5, kind: input, shape index: {}]
  %s6 = inlined_call_operand.vmem [shape: s32[8,1], index: 6, kind: input, shape index: {}]
  %s7 = inlined_call_operand.vmem [shape: f32[8,1], index: 7, kind: output, shape index: {}]
  %s8 = sld [smem:[#allocation0]]
  $region38: #{sje_mlp_train.1} parent=0
    _
  %s10 = ssub.s32 1, %s8
  %s11 = scalar_select 0, %s10, %s8
  %12 = sst [smem:[#allocation2]] %s0
  // Predicated region
  $region2: #{sje_mlp_train.1} parent=0 // pred_check
    _
  $region3: #{sje_mlp_train.1} parent=0 // pred_check_branch
    %14 = sbr.rel (0) target = $region5
  $region4: #{sje_mlp_train.1} parent=0 // pred_region
    _
  $region5: #{sje_mlp_train.1} parent=0 // pred_fallthru
    _
  // Predicated region
  $region6: #{sje_mlp_train.1} parent=0 // pred_check
    _
  $region7: #{sje_mlp_train.1} parent=0 // pred_check_branch
    %16 = sbr.rel (0) target = $region9
  $region8: #{sje_mlp_train.1} parent=0 // pred_region
    _
  $region9: #{sje_mlp_train.1} parent=0 // pred_fallthru
    _
  // Predicated region
  $region10: #{sje_mlp_train.1} parent=0 // pred_check
    _
  $region11: #{sje_mlp_train.1} parent=0 // pred_check_branch
    %18 = sbr.rel (0) target = $region13
  $region12: #{sje_mlp_train.1} parent=0 // pred_region
    _
  $region13: #{sje_mlp_train.1} parent=0 // pred_fallthru
    _
  // Predicated region
  $region14: #{sje_mlp_train.1} parent=0 // pred_check
    _
  $region15: #{sje_mlp_train.1} parent=0 // pred_check_branch
    %20 = sbr.rel (0) target = $region17
  $region16: #{sje_mlp_train.1} parent=0 // pred_region
    _
  $region17: #{sje_mlp_train.1} parent=0 // pred_fallthru
    _
  // Predicated region
  $region18: #{sje_mlp_train.1} parent=0 // pred_check
    _
  $region19: #{sje_mlp_train.1} parent=0 // pred_check_branch
    %22 = sbr.rel (0) target = $region21
  $region20: #{sje_mlp_train.1} parent=0 // pred_region
    _
  $region21: #{sje_mlp_train.1} parent=0 // pred_fallthru
    _
  // Predicated region
  $region22: #{sje_mlp_train.1} parent=0 // pred_check
    _
  $region23: #{sje_mlp_train.1} parent=0 // pred_check_branch
    %24 = sbr.rel (0) target = $region25
  $region24: #{sje_mlp_train.1} parent=0 // pred_region
    _
  $region25: #{sje_mlp_train.1} parent=0 // pred_fallthru
    _
  // Predicated region
  $region26: #{sje_mlp_train.1} parent=0 // pred_check
    _
  $region27: #{sje_mlp_train.1} parent=0 // pred_check_branch
    %26 = sbr.rel (0) target = $region29
  $region28: #{sje_mlp_train.1} parent=0 // pred_region
    _
  $region29: #{sje_mlp_train.1} parent=0 // pred_fallthru
    _
  %v28 = vld [vmem:[%s1] sm:$0xf]
  %v29 = vld [vmem:[%s2] sm:$0xff]
  %v30 = vld [vmem:[%s2 + $0x8] sm:$0xff]
  %v31 = vld [vmem:[%s2 + $0x10] sm:$0xff]
  %v32 = vld [vmem:[%s2 + $0x18] sm:$0xff]
  %v33 = vld [vmem:[%s2 + $0x20] sm:$0xff]
  %v34 = vld [vmem:[%s2 + $0x28] sm:$0xff]
  %v35 = vld [vmem:[%s2 + $0x30] sm:$0xff]
  %v36 = vld [vmem:[%s2 + $0x38] sm:$0xff]
  %v37 = vld [vmem:[%s2 + $0x40] sm:$0xff]
  %v38 = vld [vmem:[%s2 + $0x48] sm:$0xff]
  %v39 = vld [vmem:[%s2 + $0x50] sm:$0xff]
  %v40 = vld [vmem:[%s2 + $0x58] sm:$0xff]
  %v41 = vld [vmem:[%s2 + $0x60] sm:$0xff]
  %v42 = vld [vmem:[%s2 + $0x68] sm:$0xff]
  %v43 = vld [vmem:[%s2 + $0x70] sm:$0xff]
  %v44 = vld [vmem:[%s2 + $0x78] sm:$0xff]
  %v61 = vunpack.c.l.b16 %v29
  %v62 = vunpack.c.h.b16 %v29
  %v63 = vunpack.c.l.b16 %v30
  %v64 = vunpack.c.h.b16 %v30
  %v65 = vunpack.c.l.b16 %v31
  %v66 = vunpack.c.h.b16 %v31
  %v67 = vunpack.c.l.b16 %v32
  %v68 = vunpack.c.h.b16 %v32
  %v69 = vunpack.c.l.b16 %v33
  %v70 = vunpack.c.h.b16 %v33
  %v71 = vunpack.c.l.b16 %v34
  %v72 = vunpack.c.h.b16 %v34
  %v73 = vunpack.c.l.b16 %v35
  %v74 = vunpack.c.h.b16 %v35
  %v75 = vunpack.c.l.b16 %v36
  %v76 = vunpack.c.h.b16 %v36
  %v77 = vunpack.c.l.b16 %v37
  %v78 = vunpack.c.h.b16 %v37
  %v79 = vunpack.c.l.b16 %v38
  %v80 = vunpack.c.h.b16 %v38
  %v81 = vunpack.c.l.b16 %v39
  %v82 = vunpack.c.h.b16 %v39
  %v83 = vunpack.c.l.b16 %v40
  %v84 = vunpack.c.h.b16 %v40
  %v85 = vunpack.c.l.b16 %v41
  %v86 = vunpack.c.h.b16 %v41
  %v87 = vunpack.c.l.b16 %v42
  %v88 = vunpack.c.h.b16 %v42
  %v89 = vunpack.c.l.b16 %v43
  %v90 = vunpack.c.h.b16 %v43
  %v91 = vunpack.c.l.b16 %v44
  %v92 = vunpack.c.h.b16 %v44
  %v93 = vpack.c.b16 %v63, %v61
  %v94 = vpack.c.b16 %v64, %v62
  %v95 = vpack.c.b16 %v67, %v65
  %v96 = vpack.c.b16 %v68, %v66
  %v97 = vpack.c.b16 %v71, %v69
  %v98 = vpack.c.b16 %v72, %v70
  %v99 = vpack.c.b16 %v75, %v73
  %v100 = vpack.c.b16 %v76, %v74
  %v101 = vpack.c.b16 %v79, %v77
  %v102 = vpack.c.b16 %v80, %v78
  %v103 = vpack.c.b16 %v83, %v81
  %v104 = vpack.c.b16 %v84, %v82
  %v105 = vpack.c.b16 %v87, %v85
  %v106 = vpack.c.b16 %v88, %v86
  %v107 = vpack.c.b16 %v91, %v89
  %v108 = vpack.c.b16 %v92, %v90
  %125 = vmatprep.subr.bf16.mxu0 %v94
  %126 = vmatpush1.bf16.msra.mxu0 %v93
  %127 = vmatprep.subr.bf16.mxu0 %v96
  %128 = vmatpush1.bf16.msra.mxu0 %v95
  %129 = vmatprep.subr.bf16.mxu0 %v98
  %130 = vmatpush1.bf16.msra.mxu0 %v97
  %131 = vmatprep.subr.bf16.mxu0 %v100
  %132 = vmatpush1.bf16.msra.mxu0 %v99
  %133 = vmatprep.subr.bf16.mxu0 %v102
  %134 = vmatpush1.bf16.msra.mxu0 %v101
  %135 = vmatprep.subr.bf16.mxu0 %v104
  %136 = vmatpush1.bf16.msra.mxu0 %v103
  %137 = vmatprep.subr.bf16.mxu0 %v106
  %138 = vmatpush1.bf16.msra.mxu0 %v105
  %139 = vmatprep.subr.bf16.mxu0 %v108
  %140 = vmatpush1.bf16.msra.mxu0 %v107
  %141 = vmatprep.subr.bf16.mxu0 0
  %142 = vmatpush1.bf16.msra.mxu0 0
  %143 = vmatprep.subr.bf16.mxu0 0
  %144 = vmatpush1.bf16.msra.mxu0 0
  %145 = vmatprep.subr.bf16.mxu0 0
  %146 = vmatpush1.bf16.msra.mxu0 0
  %147 = vmatprep.subr.bf16.mxu0 0
  %148 = vmatpush1.bf16.msra.mxu0 0
  %149 = vmatprep.subr.bf16.mxu0 0
  %150 = vmatpush1.bf16.msra.mxu0 0
  %151 = vmatprep.subr.bf16.mxu0 0
  %152 = vmatpush1.bf16.msra.mxu0 0
  %153 = vmatprep.subr.bf16.mxu0 0
  %154 = vmatpush1.bf16.msra.mxu0 0
  %155 = vmatprep.subr.bf16.mxu0 0
  %156 = vmatpush1.bf16.msra.mxu0 0
  %157 = vmatprep.mubr.bf16.mxu0 0
  %158 = vmatmul.mubr.bf16.gmra.mrb[0].mxu0 %v28
  %v159 = vpop.f32.mrb[0].mxu0
  %v160 = vadd.f32 0.0, %v159
  %v161 = vpop.f32.mrb[0].mxu0
  %v162 = vadd.f32 0.0, %v161
  %v163 = vpop.f32.mrb[0].mxu0
  %v164 = vpop.f32.mrb[0].mxu0
  %165 = vdwg.mxu0
  %v166 = vmax.f32 %v160, 0.0
  %v167 = vmax.f32 %v162, 0.0
  %v168 = vpack.c.bf16 %v166, %v166
  %v169 = vpack.c.bf16 %v167, %v167
  %v170 = vld [vmem:[%s3] sm:$0xf]
  %v171 = vld [vmem:[%s3 + $0x4] sm:$0xf]
  %v172 = vld [vmem:[%s3 + $0x8] sm:$0xf]
  %v173 = vld [vmem:[%s3 + $0xc] sm:$0xf]
  %v174 = vld [vmem:[%s3 + $0x10] sm:$0xf]
  %v175 = vld [vmem:[%s3 + $0x14] sm:$0xf]
  %v176 = vld [vmem:[%s3 + $0x18] sm:$0xf]
  %v177 = vld [vmem:[%s3 + $0x1c] sm:$0xf]
  %v178 = vld [vmem:[%s3 + $0x20] sm:$0xf]
  %v179 = vld [vmem:[%s3 + $0x24] sm:$0xf]
  %v180 = vld [vmem:[%s3 + $0x28] sm:$0xf]
  %v181 = vld [vmem:[%s3 + $0x2c] sm:$0xf]
  %v182 = vld [vmem:[%s3 + $0x30] sm:$0xf]
  %v183 = vld [vmem:[%s3 + $0x34] sm:$0xf]
  %v184 = vld [vmem:[%s3 + $0x38] sm:$0xf]
  %v185 = vld [vmem:[%s3 + $0x3c] sm:$0xf]
  %v186 = vld [vmem:[%s3 + $0x40] sm:$0xf]
  %v187 = vld [vmem:[%s3 + $0x44] sm:$0xf]
  %v188 = vld [vmem:[%s3 + $0x48] sm:$0xf]
  %v189 = vld [vmem:[%s3 + $0x4c] sm:$0xf]
  %v190 = vld [vmem:[%s3 + $0x50] sm:$0xf]
  %v191 = vld [vmem:[%s3 + $0x54] sm:$0xf]
  %v192 = vld [vmem:[%s3 + $0x58] sm:$0xf]
  %v193 = vld [vmem:[%s3 + $0x5c] sm:$0xf]
  %v194 = vld [vmem:[%s3 + $0x60] sm:$0xf]
  %v195 = vld [vmem:[%s3 + $0x64] sm:$0xf]
  %v196 = vld [vmem:[%s3 + $0x68] sm:$0xf]
  %v197 = vld [vmem:[%s3 + $0x6c] sm:$0xf]
  %v198 = vld [vmem:[%s3 + $0x70] sm:$0xf]
  %v199 = vld [vmem:[%s3 + $0x74] sm:$0xf]
  %v200 = vld [vmem:[%s3 + $0x78] sm:$0xf]
  %v201 = vld [vmem:[%s3 + $0x7c] sm:$0xf]
  %v202 = vld [vmem:[%s4] sm:$0x1]
  %v204 = vlaneseq
  %v205 = vshrl.u32 %v204, 7
  %v206 = vsub.s32 0, %v205
  %v207 = vrot.slane %v202, %v206
  %v241 = vunpack.c.l.b16 %v170
  %v242 = vunpack.c.l.b16 %v171
  %v243 = vunpack.c.l.b16 %v172
  %v244 = vunpack.c.l.b16 %v173
  %v245 = vunpack.c.l.b16 %v174
  %v246 = vunpack.c.l.b16 %v175
  %v247 = vunpack.c.l.b16 %v176
  %v248 = vunpack.c.l.b16 %v177
  %v249 = vunpack.c.l.b16 %v178
  %v250 = vunpack.c.l.b16 %v179
  %v251 = vunpack.c.l.b16 %v180
  %v252 = vunpack.c.l.b16 %v181
  %v253 = vunpack.c.l.b16 %v182
  %v254 = vunpack.c.l.b16 %v183
  %v255 = vunpack.c.l.b16 %v184
  %v256 = vunpack.c.l.b16 %v185
  %v257 = vunpack.c.l.b16 %v186
  %v258 = vunpack.c.l.b16 %v187
  %v259 = vunpack.c.l.b16 %v188
  %v260 = vunpack.c.l.b16 %v189
  %v261 = vunpack.c.l.b16 %v190
  %v262 = vunpack.c.l.b16 %v191
  %v263 = vunpack.c.l.b16 %v192
  %v264 = vunpack.c.l.b16 %v193
  %v265 = vunpack.c.l.b16 %v194
  %v266 = vunpack.c.l.b16 %v195
  %v267 = vunpack.c.l.b16 %v196
  %v268 = vunpack.c.l.b16 %v197
  %v269 = vunpack.c.l.b16 %v198
  %v270 = vunpack.c.l.b16 %v199
  %v271 = vunpack.c.l.b16 %v200
  %v272 = vunpack.c.l.b16 %v201
  %v273 = vpack.c.b16 %v242, %v241
  %v274 = vpack.c.b16 %v244, %v243
  %v275 = vpack.c.b16 %v246, %v245
  %v276 = vpack.c.b16 %v248, %v247
  %v277 = vpack.c.b16 %v250, %v249
  %v278 = vpack.c.b16 %v252, %v251
  %v279 = vpack.c.b16 %v254, %v253
  %v280 = vpack.c.b16 %v256, %v255
  %v281 = vpack.c.b16 %v258, %v257
  %v282 = vpack.c.b16 %v260, %v259
  %v283 = vpack.c.b16 %v262, %v261
  %v284 = vpack.c.b16 %v264, %v263
  %v285 = vpack.c.b16 %v266, %v265
  %v286 = vpack.c.b16 %v268, %v267
  %v287 = vpack.c.b16 %v270, %v269
  %v288 = vpack.c.b16 %v272, %v271
  %305 = vmatprep.subr.bf16.mxu0 0
  %306 = vmatpush1.bf16.msra.mxu0 %v273
  %307 = vmatprep.subr.bf16.mxu0 0
  %308 = vmatpush1.bf16.msra.mxu0 %v274
  %309 = vmatprep.subr.bf16.mxu0 0
  %310 = vmatpush1.bf16.msra.mxu0 %v275
  %311 = vmatprep.subr.bf16.mxu0 0
  %312 = vmatpush1.bf16.msra.mxu0 %v276
  %313 = vmatprep.subr.bf16.mxu0 0
  %314 = vmatpush1.bf16.msra.mxu0 %v277
  %315 = vmatprep.subr.bf16.mxu0 0
  %316 = vmatpush1.bf16.msra.mxu0 %v278
  %317 = vmatprep.subr.bf16.mxu0 0
  %318 = vmatpush1.bf16.msra.mxu0 %v279
  %319 = vmatprep.subr.bf16.mxu0 0
  %320 = vmatpush1.bf16.msra.mxu0 %v280
  %321 = vmatprep.subr.bf16.mxu0 0
  %322 = vmatpush1.bf16.msra.mxu0 %v281
  %323 = vmatprep.subr.bf16.mxu0 0
  %324 = vmatpush1.bf16.msra.mxu0 %v282
  %325 = vmatprep.subr.bf16.mxu0 0
  %326 = vmatpush1.bf16.msra.mxu0 %v283
  %327 = vmatprep.subr.bf16.mxu0 0
  %328 = vmatpush1.bf16.msra.mxu0 %v284
  %329 = vmatprep.subr.bf16.mxu0 0
  %330 = vmatpush1.bf16.msra.mxu0 %v285
  %331 = vmatprep.subr.bf16.mxu0 0
  %332 = vmatpush1.bf16.msra.mxu0 %v286
  %333 = vmatprep.subr.bf16.mxu0 0
  %334 = vmatpush1.bf16.msra.mxu0 %v287
  %335 = vmatprep.subr.bf16.mxu0 0
  %336 = vmatpush1.bf16.msra.mxu0 %v288
  %337 = vmatprep.mubr.bf16.mxu0 %v169
  %338 = vmatmul.mubr.bf16.gmra.mrb[0].mxu0 %v168
  %v339 = vpop.f32.mrb[0].mxu0
  %v340 = vadd.f32 %v207, %v339
  %v341 = vpop.f32.mrb[0].mxu0
  %v342 = vpop.f32.mrb[0].mxu0
  %v343 = vpop.f32.mrb[0].mxu0
  %344 = vdwg.mxu0
  %v345 = vmul.f32 %v340, %v340
  %346 = vadd.xlane.f32.xlu0 %v345
  %v347 = vpop.xlane.xlu0 %346
  %v348 = vmax.f32 %v347, 1e-24
  %v349 = vrsqrt.pop %v348
  %v350 = vmul.f32 %v340, %v349
  %v351 = vpack.c.bf16 %v350, %v350
  %v352 = vld [vmem:[%s5] sm:$0xf]
  %v353 = vld [vmem:[%s5 + $0x4] sm:$0xf]
  %v354 = vld [vmem:[%s5 + $0x8] sm:$0xf]
  %v355 = vld [vmem:[%s5 + $0xc] sm:$0xf]
  %v356 = vld [vmem:[%s5 + $0x10] sm:$0xf]
  %v357 = vld [vmem:[%s5 + $0x14] sm:$0xf]
  %v358 = vld [vmem:[%s5 + $0x18] sm:$0xf]
  %v359 = vld [vmem:[%s5 + $0x1c] sm:$0xf]
  %v360 = vld [vmem:[%s5 + $0x20] sm:$0xf]
  %v361 = vld [vmem:[%s5 + $0x24] sm:$0xf]
  %v362 = vld [vmem:[%s5 + $0x28] sm:$0xf]
  %v363 = vld [vmem:[%s5 + $0x2c] sm:$0xf]
  %v364 = vld [vmem:[%s5 + $0x30] sm:$0xf]
  %v365 = vld [vmem:[%s5 + $0x34] sm:$0xf]
  %v366 = vld [vmem:[%s5 + $0x38] sm:$0xf]
  %v367 = vld [vmem:[%s5 + $0x3c] sm:$0xf]
  %v384 = vunpack.c.l.b16 %v352
  %v385 = vunpack.c.l.b16 %v353
  %v386 = vunpack.c.l.b16 %v354
  %v387 = vunpack.c.l.b16 %v355
  %v388 = vunpack.c.l.b16 %v356
  %v389 = vunpack.c.l.b16 %v357
  %v390 = vunpack.c.l.b16 %v358
  %v391 = vunpack.c.l.b16 %v359
  %v392 = vunpack.c.l.b16 %v360
  %v393 = vunpack.c.l.b16 %v361
  %v394 = vunpack.c.l.b16 %v362
  %v395 = vunpack.c.l.b16 %v363
  %v396 = vunpack.c.l.b16 %v364
  %v397 = vunpack.c.l.b16 %v365
  %v398 = vunpack.c.l.b16 %v366
  %v399 = vunpack.c.l.b16 %v367
  %v400 = vpack.c.b16 %v385, %v384
  %v401 = vpack.c.b16 %v387, %v386
  %v402 = vpack.c.b16 %v389, %v388
  %v403 = vpack.c.b16 %v391, %v390
  %v404 = vpack.c.b16 %v393, %v392
  %v405 = vpack.c.b16 %v395, %v394
  %v406 = vpack.c.b16 %v397, %v396
  %v407 = vpack.c.b16 %v399, %v398
  %416 = vmatprep.subr.bf16.mxu0 0
  %417 = vmatpush1.bf16.msra.mxu0 %v400
  %418 = vmatprep.subr.bf16.mxu0 0
  %419 = vmatpush1.bf16.msra.mxu0 %v401
  %420 = vmatprep.subr.bf16.mxu0 0
  %421 = vmatpush1.bf16.msra.mxu0 %v402
  %422 = vmatprep.subr.bf16.mxu0 0
  %423 = vmatpush1.bf16.msra.mxu0 %v403
  %424 = vmatprep.subr.bf16.mxu0 0
  %425 = vmatpush1.bf16.msra.mxu0 %v404
  %426 = vmatprep.subr.bf16.mxu0 0
  %427 = vmatpush1.bf16.msra.mxu0 %v405
  %428 = vmatprep.subr.bf16.mxu0 0
  %429 = vmatpush1.bf16.msra.mxu0 %v406
  %430 = vmatprep.subr.bf16.mxu0 0
  %431 = vmatpush1.bf16.msra.mxu0 %v407
  %432 = vmatprep.subr.bf16.mxu0 0
  %433 = vmatpush1.bf16.msra.mxu0 0
  %434 = vmatprep.subr.bf16.mxu0 0
  %435 = vmatpush1.bf16.msra.mxu0 0
  %436 = vmatprep.subr.bf16.mxu0 0
  %437 = vmatpush1.bf16.msra.mxu0 0
  %438 = vmatprep.subr.bf16.mxu0 0
  %439 = vmatpush1.bf16.msra.mxu0 0
  %440 = vmatprep.subr.bf16.mxu0 0
  %441 = vmatpush1.bf16.msra.mxu0 0
  %442 = vmatprep.subr.bf16.mxu0 0
  %443 = vmatpush1.bf16.msra.mxu0 0
  %444 = vmatprep.subr.bf16.mxu0 0
  %445 = vmatpush1.bf16.msra.mxu0 0
  %446 = vmatprep.subr.bf16.mxu0 0
  %447 = vmatpush1.bf16.msra.mxu0 0
  %448 = vmatprep.mubr.bf16.mxu0 0
  %449 = vmatmul.mubr.bf16.gmra.mrb[0].mxu0 %v351
  %v450 = vpop.f32.mrb[0].mxu0
  %v451 = vadd.f32 0.0, %v450
  %v452 = vpop.f32.mrb[0].mxu0
  %v453 = vpop.f32.mrb[0].mxu0
  %v454 = vpop.f32.mrb[0].mxu0
  %455 = vdwg.mxu0
  %v456 = vld [vmem:[%s6] sm:$0xff]
  %s457 = sld [smem:[#allocation2]]
  %v458 = vlaneseq
  %v459 = vand.u32 %v458, 127
  %460 = vset.pattern.permute.xlu0 0
  %461 = vperm.xlu0 %460, %v456
  %v462 = vpop.permute.xlu0 %461
  %vm463 = vcmp.eq.s32.totalorder %v459, %v462
  %v464 = vsel %vm463, %v451, 0.0
  %465 = vadd.xlane.f32.xlu0 %v464
  %v466 = vpop.xlane.xlu0 %465
  %v467 = vstv %s457
  %v468 = vadd.f32 %v467, %v451
  %v469 = vsub.f32 %v468, %v466
  %v470 = vsel %vm463, 0.0, %v469
  %vm471 = vcmp.lt.s32.totalorder %v459, 10
  %v472 = vsel %vm471, %v470, -inf
  %473 = vmax.xlane.f32.xlu0 %v472
  %v474 = vpop.xlane.xlu0 %473
  %v475 = vmax.f32 %v474, 0.0
  %s476 = smul.u32 0, 8
  %v477 = vlaneseq
  %v478 = vshrl.u32 %v477, 7
  %v479 = vstv %s476
  %v480 = vadd.s32 %v479, %v478
  %vm481 = vcmp.lt.s32.totalorder %v480, 8
  %v482 = vsel %vm481, %v475, 0.0
  %vm483 = vcmask 7168
  %484 = vst.msk [vmem:[%s7] sm:$0xff] %vm483, %v482
  // Predicated region
  $region30: #{sje_mlp_train.1} parent=0 // pred_check
    _
  $region31: #{sje_mlp_train.1} parent=0 // pred_check_branch
    %486 = sbr.rel (0) target = $region33
  $region32: #{sje_mlp_train.1} parent=0 // pred_region
    _
  $region33: #{sje_mlp_train.1} parent=0 // pred_fallthru
    _
  // Predicated region
  $region34: #{sje_mlp_train.1} parent=0 // pred_check
    _
  $region35: #{sje_mlp_train.1} parent=0 // pred_check_branch
    %488 = sbr.rel (0) target = $region37
  $region36: #{sje_mlp_train.1} parent=0 // pred_region
    _
  $region37: #{sje_mlp_train.1} parent=0 // pred_fallthru
    _

</llo_original>
